<compile_context>
chip_gen: v6e
topology: v6e:2x2x1
jax: 0.10.0
libtpu: 0.0.40
codegen_flags: <defaults>
</compile_context>

<pallas_src>
import functools

import jax
import jax.numpy as jnp
import numpy as np
from jax.experimental import pallas as pl
from jax.experimental.pallas import tpu as pltpu

WIN = 9                      # window size (module default)
PAD = WIN // 2               # 4
_WIN_SIZE = float(WIN * WIN)
_LANE = 128
_SUBLANE = 8


def _round_up(x, m):
    return ((x + m - 1) // m) * m


def _ncc_kernel(bh_ref, bw_ref, it_ref, ip_ref, out_ref, *, nb, Hp, c_out):
    """One tile of nb images — (nb*Hp, W) rows of each input — per grid step."""
    Ii = it_ref[...].astype(jnp.float32)                    # (nb*Hp, W)
    Ji = ip_ref[...].astype(jnp.float32)

    # Five windowed-sum operands fused into a single column-band MXU matmul
    # (row-stacked, quantity-major).
    S = jnp.concatenate([Ii, Ji, Ii * Ii, Ji * Ji, Ii * Ji], axis=0)   # (5*nb*Hp, W)
    T = jnp.dot(S, bw_ref[...], preferred_element_type=jnp.float32)    # (5*nb*Hp, c_out)

    # Row-direction box sum: per-image banded matrix applied as a batched
    # matmul over the 5*nb slabs (no quadratic block-diagonal matrix).
    Tb = T.reshape(5 * nb, Hp, c_out)
    bh = jnp.broadcast_to(bh_ref[...], (5 * nb, Hp, Hp))
    B = jnp.einsum('brh,bhc->brc', bh, Tb,
                   preferred_element_type=jnp.float32)                 # (5*nb, Hp, c_out)

    I_sum = B[0 * nb:1 * nb]
    J_sum = B[1 * nb:2 * nb]
    I2_sum = B[2 * nb:3 * nb]
    J2_sum = B[3 * nb:4 * nb]
    IJ_sum = B[4 * nb:5 * nb]

    # Simplified (algebraically identical) moment math.
    inv_win = 1.0 / _WIN_SIZE
    cross = IJ_sum - I_sum * J_sum * inv_win
    I_var = I2_sum - I_sum * I_sum * inv_win
    J_var = J2_sum - J_sum * J_sum * inv_win
    cc = (cross * cross) * pl.reciprocal(I_var * J_var + 1e-5, approx=True)

    # Lane-dense (8, c_out) partial sum; padded rows / lanes / images give 0.
    out_ref[...] = jnp.sum(cc.reshape(-1, _SUBLANE, c_out), axis=0)


def _vmem_capacity_bytes():
    try:
        return int(pltpu.get_tpu_info().vmem_capacity_bytes)
    except Exception:
        return 64 * 1024 * 1024          # conservative (v7x-sized) fallback


def _choose_nb(N, Hp, W, c_out, itemsize, vmem_cap):
    """Images per grid step under a per-step VMEM residency budget."""
    budget = max(vmem_cap // 4, 8 * 1024 * 1024)
    per_img = Hp * W * (4 * itemsize + 7 * 4)    # double-buffered inputs + Ii/Ji + 5-stack
    per_img += 5 * Hp * c_out * 4                # column box result
    per_img += 5 * Hp * Hp * 4                   # broadcast row band for the batched matmul
    per_img += 9 * Hp * c_out * 4                # row box sums + cross/var/cc temporaries
    nb = max(1, budget // max(1, per_img))
    if N >= 2:
        nb = min(nb, (N + 1) // 2)   # keep >= 2 grid steps so both v7x TCs get work
    return int(min(nb, N))


def ncc_loss(y_true, y_pred, nb=None):
    """Pallas NCC loss for NCHW inputs with C == 1 (the module's 2-D path)."""
    # TODO(synk): only the 2-D (NCHW, C == 1) path of the module is implemented;
    # the 1-D / 3-D conv variants would need their own banded-sum layouts.
    N, C, H, W = y_true.shape
    assert C == 1, "sum filter is [1,1,win,win] -> single channel expected"
    assert y_pred.shape == y_true.shape

    Hp = _round_up(H, _SUBLANE)
    c_out = _round_up(W, _LANE)
    itemsize = np.dtype(y_true.dtype).itemsize
    vmem_cap = _vmem_capacity_bytes()

    if nb is None:
        nb = _choose_nb(N, Hp, W, c_out, itemsize, vmem_cap)
    steps = (N + nb - 1) // nb
    n_pad = steps * nb

    x = y_true[:, 0]                     # (N, H, W), original dtype
    y = y_pred[:, 0]
    if n_pad != N or Hp != H:            # zero rows / images contribute cc == 0
        pad = ((0, n_pad - N), (0, Hp - H), (0, 0))
        x = jnp.pad(x, pad)
        y = jnp.pad(y, pad)
    x = x.reshape(n_pad * Hp, W)         # 2-D, (8,128)-friendly view (no in-kernel reshape)
    y = y.reshape(n_pad * Hp, W)

    # Banded ones matrices built once on the host.  The row band is per-image
    # (Hp x Hp, output rows >= H zeroed); the column band folds the conv's
    # zero "same" padding and the lane padding (columns >= W zeroed).
    ri = np.arange(Hp)[:, None]
    rj = np.arange(Hp)[None, :]
    bh = ((np.abs(ri - rj) <= PAD) & (ri < H) & (rj < H)).astype(np.float32)   # (Hp, Hp)
    wi = np.arange(W)[:, None]
    ci = np.arange(c_out)[None, :]
    bw = ((np.abs(wi - ci) <= PAD) & (ci < W)).astype(np.float32)              # (W, c_out)

    kernel = functools.partial(_ncc_kernel, nb=nb, Hp=Hp, c_out=c_out)

    partials = pl.pallas_call(
        kernel,
        out_shape=jax.ShapeDtypeStruct((steps * _SUBLANE, c_out), jnp.float32),
        grid_spec=pltpu.PrefetchScalarGridSpec(
            num_scalar_prefetch=0,
            grid=(steps,),
            in_specs=[
                pl.BlockSpec((Hp, Hp), lambda b: (0, 0)),        # row band (constant)
                pl.BlockSpec((W, c_out), lambda b: (0, 0)),      # col band (constant)
                pl.BlockSpec((nb * Hp, W), lambda b: (b, 0)),    # y_true tile
                pl.BlockSpec((nb * Hp, W), lambda b: (b, 0)),    # y_pred tile
            ],
            out_specs=pl.BlockSpec((_SUBLANE, c_out), lambda b: (b, 0)),
        ),
        compiler_params=pltpu.CompilerParams(
            dimension_semantics=("parallel",),
            vmem_limit_bytes=min(int(vmem_cap * 3 // 4), 100 * 1024 * 1024)),
    )(jnp.asarray(bh), jnp.asarray(bw), x, y)

    # -mean(cc) over all N*C*H*W output positions (original, unpadded shape).
    return -jnp.sum(partials) / (N * C * H * W)


def _ncc_reference(y_true, y_pred):
    """Pure-JAX mirror of the PyTorch module (2-D path)."""
    Ii = y_true.astype(jnp.float32)
    Ji = y_pred.astype(jnp.float32)

    def box(v):
        return jax.lax.reduce_window(
            v, jnp.float32(0.0), jax.lax.add,
            window_dimensions=(1, 1, WIN, WIN),
            window_strides=(1, 1, 1, 1),
            padding=((0, 0), (0, 0), (PAD, PAD), (PAD, PAD)))

    I2, J2, IJ = Ii * Ii, Ji * Ji, Ii * Ji
    I_sum, J_sum = box(Ii), box(Ji)
    I2_sum, J2_sum, IJ_sum = box(I2), box(J2), box(IJ)
    win_size = float(WIN * WIN)
    u_I, u_J = I_sum / win_size, J_sum / win_size
    cross = IJ_sum - u_J * I_sum - u_I * J_sum + u_I * u_J * win_size
    I_var = I2_sum - 2 * u_I * I_sum + u_I * u_I * win_size
    J_var = J2_sum - 2 * u_J * J_sum + u_J * u_J * win_size
    cc = cross * cross / (I_var * J_var + 1e-5)
    return -jnp.mean(cc)


if __name__ == "__main__":
    key = jax.random.PRNGKey(0)
    k1, k2 = jax.random.split(key)

    # NCHW, single channel (required by the module's [1,1,win,win] filter).
    y_true = jax.random.normal(k1, (2, 1, 16, 16), dtype=jnp.float32)
    y_pred = jax.random.normal(k2, (2, 1, 16, 16), dtype=jnp.float32)

    out = jax.block_until_ready(ncc_loss(y_true, y_pred))
    ref = jax.block_until_ready(_ncc_reference(y_true, y_pred))
    assert np.allclose(np.asarray(out), np.asarray(ref), rtol=5e-3, atol=1e-5), (out, ref)

    # Exercise batch padding, a multi-step grid and a non-multiple-of-128 width.
    k3, k4 = jax.random.split(k2)
    yt2 = jax.random.normal(k3, (3, 1, 16, 20), dtype=jnp.float32)
    yp2 = jax.random.normal(k4, (3, 1, 16, 20), dtype=jnp.float32)
    out2 = jax.block_until_ready(ncc_loss(yt2, yp2, nb=2))
    ref2 = jax.block_until_ready(_ncc_reference(yt2, yp2))
    assert np.allclose(np.asarray(out2), np.asarray(ref2), rtol=5e-3, atol=1e-5), (out2, ref2)

    print("KERNEL_OK")
</pallas_src>

<mosaic_0001>
module attributes {stable_mosaic.version = 11 : i64} {
  func.func @_ncc_kernel(%arg0: i32, %arg1: memref<16x16xf32, #tpu.memory_space<vmem>>, %arg2: memref<16x128xf32, #tpu.memory_space<vmem>>, %arg3: memref<16x16xf32, #tpu.memory_space<vmem>>, %arg4: memref<16x16xf32, #tpu.memory_space<vmem>>, %arg5: memref<8x128xf32, #tpu.memory_space<vmem>>) attributes {dimension_semantics = [#tpu.dimension_semantics<parallel>], iteration_bounds = array<i64: 2>, scalar_prefetch = 0 : i64, scratch_operands = 0 : i64, tpu.core_type = #tpu.core_type<tc>, window_params = [{pipeline_mode = #tpu.pipeline_mode<synchronous>, transform_indices = @transform_0, window_bounds = array<i64: 16, 16>}, {pipeline_mode = #tpu.pipeline_mode<synchronous>, transform_indices = @transform_1, window_bounds = array<i64: 16, 128>}, {transform_indices = @transform_2, window_bounds = array<i64: 16, 16>}, {transform_indices = @transform_3, window_bounds = array<i64: 16, 16>}, {transform_indices = @transform_4, window_bounds = array<i64: 8, 128>}]} {
    %c0 = arith.constant 0 : index
    %c0_0 = arith.constant 0 : index
    %0 = vector.load %arg3[%c0, %c0_0] : memref<16x16xf32, #tpu.memory_space<vmem>>, vector<16x16xf32>
    %c0_1 = arith.constant 0 : index
    %c0_2 = arith.constant 0 : index
    %1 = vector.load %arg4[%c0_1, %c0_2] : memref<16x16xf32, #tpu.memory_space<vmem>>, vector<16x16xf32>
    %2 = arith.mulf %0, %0 : vector<16x16xf32>
    %3 = arith.mulf %1, %1 : vector<16x16xf32>
    %4 = arith.mulf %0, %1 : vector<16x16xf32>
    %5 = tpu.concatenate %0, %1, %2, %3, %4 in 0 : vector<16x16xf32>, vector<16x16xf32>, vector<16x16xf32>, vector<16x16xf32>, vector<16x16xf32> -> vector<80x16xf32>
    %c0_3 = arith.constant 0 : index
    %c0_4 = arith.constant 0 : index
    %6 = vector.load %arg2[%c0_3, %c0_4] : memref<16x128xf32, #tpu.memory_space<vmem>>, vector<16x128xf32>
    %cst = arith.constant dense<0.000000e+00> : vector<80x128xf32>
    %7 = tpu.matmul %5, %6, %cst {dimension_numbers = #tpu.dot_dimension_numbers<[1], [0], [0], [1], [0, 0, 1, 1], [], []>} : vector<80x16xf32>, vector<16x128xf32>, vector<80x128xf32> -> vector<80x128xf32>
    %8 = vector.shape_cast %7 : vector<80x128xf32> to vector<5x16x128xf32>
    %c0_5 = arith.constant 0 : index
    %c0_6 = arith.constant 0 : index
    %9 = vector.load %arg1[%c0_5, %c0_6] : memref<16x16xf32, #tpu.memory_space<vmem>>, vector<16x16xf32>
    %10 = vector.shape_cast %9 : vector<16x16xf32> to vector<1x16x16xf32>
    %11 = vector.broadcast %10 : vector<1x16x16xf32> to vector<5x16x16xf32>
    "tpu.trace_start"() <{level = 10 : i32, message = "brh,bhc->brc"}> : () -> ()
    %cst_7 = arith.constant dense<0.000000e+00> : vector<5x16x128xf32>
    %12 = tpu.matmul %11, %8, %cst_7 {dimension_numbers = #tpu.dot_dimension_numbers<[2], [1], [1], [2], [0, 0, 0, 1, 1, 2], [0], [0]>} : vector<5x16x16xf32>, vector<5x16x128xf32>, vector<5x16x128xf32> -> vector<5x16x128xf32>
    "tpu.trace_stop"() : () -> ()
    %13 = vector.extract_strided_slice %12 {offsets = [0, 0, 0], sizes = [1, 16, 128], strides = [1, 1, 1]} : vector<5x16x128xf32> to vector<1x16x128xf32>
    %14 = vector.extract_strided_slice %12 {offsets = [1, 0, 0], sizes = [1, 16, 128], strides = [1, 1, 1]} : vector<5x16x128xf32> to vector<1x16x128xf32>
    %15 = vector.extract_strided_slice %12 {offsets = [2, 0, 0], sizes = [1, 16, 128], strides = [1, 1, 1]} : vector<5x16x128xf32> to vector<1x16x128xf32>
    %16 = vector.extract_strided_slice %12 {offsets = [3, 0, 0], sizes = [1, 16, 128], strides = [1, 1, 1]} : vector<5x16x128xf32> to vector<1x16x128xf32>
    %17 = vector.extract_strided_slice %12 {offsets = [4, 0, 0], sizes = [1, 16, 128], strides = [1, 1, 1]} : vector<5x16x128xf32> to vector<1x16x128xf32>
    %18 = arith.mulf %13, %14 : vector<1x16x128xf32>
    %cst_8 = arith.constant 0.0123456791 : f32
    %19 = vector.broadcast %cst_8 : f32 to vector<1x16x128xf32>
    %20 = arith.mulf %18, %19 : vector<1x16x128xf32>
    %21 = arith.subf %17, %20 : vector<1x16x128xf32>
    %22 = arith.mulf %13, %13 : vector<1x16x128xf32>
    %cst_9 = arith.constant 0.0123456791 : f32
    %23 = vector.broadcast %cst_9 : f32 to vector<1x16x128xf32>
    %24 = arith.mulf %22, %23 : vector<1x16x128xf32>
    %25 = arith.subf %15, %24 : vector<1x16x128xf32>
    %26 = arith.mulf %14, %14 : vector<1x16x128xf32>
    %cst_10 = arith.constant 0.0123456791 : f32
    %27 = vector.broadcast %cst_10 : f32 to vector<1x16x128xf32>
    %28 = arith.mulf %26, %27 : vector<1x16x128xf32>
    %29 = arith.subf %16, %28 : vector<1x16x128xf32>
    %30 = arith.mulf %21, %21 : vector<1x16x128xf32>
    %31 = arith.mulf %25, %29 : vector<1x16x128xf32>
    %cst_11 = arith.constant 9.99999974E-6 : f32
    %32 = vector.broadcast %cst_11 : f32 to vector<1x16x128xf32>
    %33 = arith.addf %31, %32 : vector<1x16x128xf32>
    %34 = tpu.reciprocal %33 {approx = true} : vector<1x16x128xf32> -> vector<1x16x128xf32>
    %35 = arith.mulf %30, %34 : vector<1x16x128xf32>
    %36 = vector.shape_cast %35 : vector<1x16x128xf32> to vector<2x8x128xf32>
    %cst_12 = arith.constant dense<0.000000e+00> : vector<8x128xf32>
    %37 = vector.multi_reduction <add>, %36, %cst_12 [0] : vector<2x8x128xf32> to vector<8x128xf32>
    %c0_13 = arith.constant 0 : index
    %c0_14 = arith.constant 0 : index
    %38 = vector.load %arg5[%c0_13, %c0_14] : memref<8x128xf32, #tpu.memory_space<vmem>>, vector<8x128xf32>
    tpu.vector_store %arg5[%c0_13, %c0_14], %37 {strides = array<i32>} : memref<8x128xf32, #tpu.memory_space<vmem>>, vector<8x128xf32>,
    return
  }
  func.func @transform_0(%arg0: i32) -> (i32, i32) {
    %c0_i32 = arith.constant 0 : i32
    %c0_i32_0 = arith.constant 0 : i32
    %c0_i32_1 = arith.constant 0 : i32
    return %c0_i32, %c0_i32_0 : i32, i32
  }
  func.func @transform_1(%arg0: i32) -> (i32, i32) {
    %c0_i32 = arith.constant 0 : i32
    %c0_i32_0 = arith.constant 0 : i32
    %c0_i32_1 = arith.constant 0 : i32
    return %c0_i32, %c0_i32_0 : i32, i32
  }
  func.func @transform_2(%arg0: i32) -> (i32, i32) {
    %c0_i32 = arith.constant 0 : i32
    %c0_i32_0 = arith.constant 0 : i32
    return %arg0, %c0_i32 : i32, i32
  }
  func.func @transform_3(%arg0: i32) -> (i32, i32) {
    %c0_i32 = arith.constant 0 : i32
    %c0_i32_0 = arith.constant 0 : i32
    return %arg0, %c0_i32 : i32, i32
  }
  func.func @transform_4(%arg0: i32) -> (i32, i32) {
    %c0_i32 = arith.constant 0 : i32
    %c0_i32_0 = arith.constant 0 : i32
    return %arg0, %c0_i32 : i32, i32
  }
}

</mosaic_0001>

<llo_original>
// kernel: tpu_custom_call.1
$region0: #{tpu_custom_call.1}
  #allocation0 [shape = 'u32[]', space=smem, size = 0x4, offset = 0x4, fixed_abs, tag = 'smem constant byte address 0x4 - core index']
  #allocation1 [shape = 'u32[144,128]{1,0:T(1,128)}', space=vmem, size = 0x12000, scoped, tag = 'internal scratch']
  %s0 = inlined_call_operand.vmem [shape: f32[16,16], index: 0, kind: input, shape index: {}]
  %s1 = inlined_call_operand.vmem [shape: f32[16,128], index: 1, kind: input, shape index: {}]
  %s2 = inlined_call_operand.vmem [shape: f32[32,16], index: 2, kind: input, shape index: {}]
  %s3 = inlined_call_operand.vmem [shape: f32[32,16], index: 3, kind: input, shape index: {}]
  %s4 = inlined_call_operand.hbm [shape: f32[16,128], index: 4, kind: output, shape index: {}]
  %s5 = sld [smem:[#allocation0]]
  $region49: #{tpu_custom_call.1} parent=0
    _
  %s7 = ssub.s32 1, %s5
  %s8 = scalar_select 0, %s7, %s5
  $region1: #{tpu_custom_call.1} parent=0
    #allocation2 [shape = 'u8[8192]{0}', space=vmem, size = 0x2000, scoped, tag = 'output window, operand 0']
    #allocation3 [shape = 's32[2]{0}', space=sflag, size = 0x8, scoped, tag = 'scoped memory for tpu_custom_call.1']
    %9 = vsyncpa [#allocation3], 0
    %s10 = scalar_lea.sflag [#allocation3], 1
    %11 = vsyncpa %s10, 0
    loop: start=0, step=1, limit=4
    $region2: #{tpu_custom_call.1} parent=1 // loop_pre_header
      _
    $region3: #{tpu_custom_call.1} parent=1 // loop_header
      %s13 = sphi 0, %s17
      %p14 = scmp.ge.s32.totalorder %s13, 4
      %s21 = sphi 0, %s21
      %s23 = sphi 0, %s21
      %s24 = sphi 0, %s23
      %s38 = sphi 0, %s24
      %s42 = sphi 0, %s42
      %s44 = sphi 0, %s42
      %s45 = sphi 0, %s44
      %s59 = sphi 0, %s45
      %s65 = sphi 0, %s67
      %s68 = sphi 0, %s65
      %s69 = sphi 0, %s68
      %s85 = sphi 0, %s69
      %s91 = sphi 0, %s93
      %s94 = sphi 0, %s91
      %s95 = sphi 0, %s94
      %s111 = sphi 0, %s95
      %s117 = sphi 0, %s119
      %s120 = sphi 0, %s117
      %s121 = sphi 0, %s120
      %s137 = sphi 0, %s121
    $region4: #{tpu_custom_call.1} parent=1 // loop_header_branch
      %16 = sbr.rel (%p14) target = $region8
    $region5: #{tpu_custom_call.1} parent=1 // loop_body
      %s18 = ssub.s32 %s13, 1
      %s19 = ssub.s32 %s13, 2
      %s20 = sadd.s32 %s13, 1
      %s22 = sadd.s32 %s21, 1
      %p25 = scmp.eq.s32.totalorder %s13, 1
      %p26 = scmp.ne.s32.totalorder %s21, %s23
      %p27 = scmp.eq.s32.totalorder %s13, 0
      %p28 = por %p26, %p27
      %p29 = scmp.ne.s32.totalorder %s21, %s23
      %p30 = scmp.eq.s32.totalorder %s18, 1
      %p31 = por %p29, %p30
      %p32 = scmp.ne.s32.totalorder %s23, %s24
      %p33 = scmp.eq.s32.totalorder %s18, 0
      %p34 = por %p32, %p33
      %p35 = scmp.ne.s32.totalorder %s23, %s24
      %p36 = scmp.eq.s32.totalorder %s19, 1
      %p37 = por %p35, %p36
      %p39 = scmp.ne.s32.totalorder %s24, %s38
      %p40 = scmp.eq.s32.totalorder %s19, 0
      %p41 = por %p39, %p40
      %s43 = sadd.s32 %s42, 1
      %p46 = scmp.eq.s32.totalorder %s13, 1
      %p47 = scmp.ne.s32.totalorder %s42, %s44
      %p48 = scmp.eq.s32.totalorder %s13, 0
      %p49 = por %p47, %p48
      %p50 = scmp.ne.s32.totalorder %s42, %s44
      %p51 = scmp.eq.s32.totalorder %s18, 1
      %p52 = por %p50, %p51
      %p53 = scmp.ne.s32.totalorder %s44, %s45
      %p54 = scmp.eq.s32.totalorder %s18, 0
      %p55 = por %p53, %p54
      %p56 = scmp.ne.s32.totalorder %s44, %s45
      %p57 = scmp.eq.s32.totalorder %s19, 1
      %p58 = por %p56, %p57
      %p60 = scmp.ne.s32.totalorder %s45, %s59
      %p61 = scmp.eq.s32.totalorder %s19, 0
      %p62 = por %p60, %p61
      %s63 = ssub.s32 %s13, %s20
      %p64 = scmp.eq.s32.totalorder %s63, 0
      %s66 = sadd.s32 %s65, 1
      %s67 = scalar_select %p64, %s65, %s66
      %p70 = pneg %p64
      %p71 = scmp.eq.s32.totalorder %s13, 1
      %p72 = por %p70, %p71
      %p73 = scmp.ne.s32.totalorder %s65, %s68
      %p74 = scmp.eq.s32.totalorder %s13, 0
      %p75 = por %p73, %p74
      %p76 = scmp.ne.s32.totalorder %s65, %s68
      %p77 = scmp.eq.s32.totalorder %s18, 1
      %p78 = por %p76, %p77
      %p79 = scmp.ne.s32.totalorder %s68, %s69
      %p80 = scmp.eq.s32.totalorder %s18, 0
      %p81 = por %p79, %p80
      %p82 = scmp.ne.s32.totalorder %s68, %s69
      %p83 = scmp.eq.s32.totalorder %s19, 1
      %p84 = por %p82, %p83
      %p86 = scmp.ne.s32.totalorder %s69, %s85
      %p87 = scmp.eq.s32.totalorder %s19, 0
      %p88 = por %p86, %p87
      %s89 = ssub.s32 %s13, %s20
      %p90 = scmp.eq.s32.totalorder %s89, 0
      %s92 = sadd.s32 %s91, 1
      %s93 = scalar_select %p90, %s91, %s92
      %p96 = pneg %p90
      %p97 = scmp.eq.s32.totalorder %s13, 1
      %p98 = por %p96, %p97
      %p99 = scmp.ne.s32.totalorder %s91, %s94
      %p100 = scmp.eq.s32.totalorder %s13, 0
      %p101 = por %p99, %p100
      %p102 = scmp.ne.s32.totalorder %s91, %s94
      %p103 = scmp.eq.s32.totalorder %s18, 1
      %p104 = por %p102, %p103
      %p105 = scmp.ne.s32.totalorder %s94, %s95
      %p106 = scmp.eq.s32.totalorder %s18, 0
      %p107 = por %p105, %p106
      %p108 = scmp.ne.s32.totalorder %s94, %s95
      %p109 = scmp.eq.s32.totalorder %s19, 1
      %p110 = por %p108, %p109
      %p112 = scmp.ne.s32.totalorder %s95, %s111
      %p113 = scmp.eq.s32.totalorder %s19, 0
      %p114 = por %p112, %p113
      %s115 = ssub.s32 %s13, %s20
      %p116 = scmp.eq.s32.totalorder %s115, 0
      %s118 = sadd.s32 %s117, 1
      %s119 = scalar_select %p116, %s117, %s118
      %p122 = pneg %p116
      %p123 = scmp.eq.s32.totalorder %s13, 1
      %p124 = por %p122, %p123
      %p125 = scmp.ne.s32.totalorder %s117, %s120
      %p126 = scmp.eq.s32.totalorder %s13, 0
      %p127 = por %p125, %p126
      %p128 = scmp.ne.s32.totalorder %s117, %s120
      %p129 = scmp.eq.s32.totalorder %s18, 1
      %p130 = por %p128, %p129
      %p131 = scmp.ne.s32.totalorder %s120, %s121
      %p132 = scmp.eq.s32.totalorder %s18, 0
      %p133 = por %p131, %p132
      %p134 = scmp.ne.s32.totalorder %s120, %s121
      %p135 = scmp.eq.s32.totalorder %s19, 1
      %p136 = por %p134, %p135
      %p138 = scmp.ne.s32.totalorder %s121, %s137
      %p139 = scmp.eq.s32.totalorder %s19, 0
      %p140 = por %p138, %p139
      %p141 = scmp.le.s32.totalorder 1, %s13
      %p142 = scmp.lt.s32.totalorder %s13, 3
      %p143 = pnand %p141, %p142
      %p144 = pneg %p143
      // Predicated region
      $region9: #{tpu_custom_call.1} parent=5 // pred_check
        _
      $region10: #{tpu_custom_call.1} parent=5 // pred_check_branch
        %146 = sbr.rel (%p143) target = $region12
      $region11: #{tpu_custom_call.1} parent=5 // pred_region
        %s147 = ssub.s32 %s13, 1
        // Predicated region
        $region13: #{tpu_custom_call.1} parent=11 // pred_check
          %p148 = pneg %p34
        $region14: #{tpu_custom_call.1} parent=11 // pred_check_branch
          %150 = sbr.rel (%p148) target = $region16
        $region15: #{tpu_custom_call.1} parent=11 // pred_region
          _
        $region16: #{tpu_custom_call.1} parent=11 // pred_fallthru
          _
        // Predicated region
        $region17: #{tpu_custom_call.1} parent=11 // pred_check
          %p151 = pneg %p55
        $region18: #{tpu_custom_call.1} parent=11 // pred_check_branch
          %153 = sbr.rel (%p151) target = $region20
        $region19: #{tpu_custom_call.1} parent=11 // pred_region
          _
        $region20: #{tpu_custom_call.1} parent=11 // pred_fallthru
          _
      $region12: #{tpu_custom_call.1} parent=5 // pred_fallthru
        _
      %p154 = scmp.lt.s32.totalorder %s13, 2
      // Predicated region
      $region21: #{tpu_custom_call.1} parent=5 // pred_check
        %p155 = pneg %p154
      $region22: #{tpu_custom_call.1} parent=5 // pred_check_branch
        %157 = sbr.rel (%p155) target = $region24
      $region23: #{tpu_custom_call.1} parent=5 // pred_region
        // Predicated region
        $region25: #{tpu_custom_call.1} parent=23 // pred_check
          %p158 = pneg %p75
        $region26: #{tpu_custom_call.1} parent=23 // pred_check_branch
          %160 = sbr.rel (%p158) target = $region28
        $region27: #{tpu_custom_call.1} parent=23 // pred_region
          %s161 = smul.u32 2, %s13
          %p162 = scmp.lt.s32.totalorder %s161, 3
          %s163 = scalar_select %p162, %s161, 3
          %s164 = smul.addr %s163, 8
          %s165 = scalar_lea.vmem %s2, %s164
          %s166 = smul.u32 2, %s13
        $region28: #{tpu_custom_call.1} parent=23 // pred_fallthru
          _
        // Predicated region
        $region29: #{tpu_custom_call.1} parent=23 // pred_check
          %p167 = pneg %p101
        $region30: #{tpu_custom_call.1} parent=23 // pred_check_branch
          %169 = sbr.rel (%p167) target = $region32
        $region31: #{tpu_custom_call.1} parent=23 // pred_region
          %s170 = smul.u32 2, %s13
          %p171 = scmp.lt.s32.totalorder %s170, 3
          %s172 = scalar_select %p171, %s170, 3
          %s173 = smul.addr %s172, 8
          %s174 = scalar_lea.vmem %s3, %s173
          %s175 = smul.u32 2, %s13
        $region32: #{tpu_custom_call.1} parent=23 // pred_fallthru
          _
      $region24: #{tpu_custom_call.1} parent=5 // pred_fallthru
        _
      %p176 = scmp.le.s32.totalorder 1, %s13
      %p177 = scmp.lt.s32.totalorder %s13, 3
      %p178 = pnand %p176, %p177
      %p179 = pneg %p178
      // Predicated region
      $region33: #{tpu_custom_call.1} parent=5 // pred_check
        _
      $region34: #{tpu_custom_call.1} parent=5 // pred_check_branch
        %181 = sbr.rel (%p178) target = $region36
      $region35: #{tpu_custom_call.1} parent=5 // pred_region
        %s182 = ssub.s32 %s13, 1
        %p183 = pneg %p34
        %p184 = pneg %p31
        %p185 = pneg %p55
        %p186 = pneg %p52
        %s187 = smul.u32 2, %s18
        %p188 = scmp.lt.s32.totalorder %s187, 3
        %s189 = scalar_select %p188, %s187, 3
        %s190 = smul.addr %s189, 8
        %s191 = scalar_lea.vmem %s2, %s190
        %p192 = pneg %p81
        %p193 = pneg %p78
        %s194 = smul.u32 2, %s18
        %p195 = scmp.lt.s32.totalorder %s194, 3
        %s196 = scalar_select %p195, %s194, 3
        %s197 = smul.addr %s196, 8
        %s198 = scalar_lea.vmem %s3, %s197
        %p199 = pneg %p107
        %p200 = pneg %p104
        %p201 = pneg %p133
        %p202 = pneg %p130
        %s203 = sand.u32 %s120, 1
        %s204 = scalar_lea.sflag [#allocation3], %s203
        %s205 = sand.u32 %s120, 1
        %s206 = smul.addr %s205, 8
        %s207 = scalar_lea.vmem [#allocation2], %s206
        %s208 = smul.u32 2, %s18
        %p209 = scmp.lt.s32.totalorder %s208, 3
        %s210 = scalar_select %p209, %s208, 3
        %s211 = smul.addr %s210, 8
        %s212 = scalar_lea.vmem %s2, %s211
        %s213 = smul.u32 2, %s18
        %s214 = smul.u32 2, %s18
        %p215 = scmp.lt.s32.totalorder %s214, 3
        %s216 = scalar_select %p215, %s214, 3
        %s217 = smul.addr %s216, 8
        %s218 = scalar_lea.vmem %s3, %s217
        %s219 = smul.u32 2, %s18
        %v220 = vld [vmem:[%s212] sm:$0xff]
        %v221 = vld [vmem:[%s212 + $0x8] sm:$0xff]
        %v222 = vld [vmem:[%s218] sm:$0xff]
        %v223 = vld [vmem:[%s218 + $0x8] sm:$0xff]
        %v224 = vmul.f32 %v220, %v220
        %v225 = vmul.f32 %v221, %v221
        %v226 = vmul.f32 %v222, %v222
        %v227 = vmul.f32 %v223, %v223
        %v228 = vmul.f32 %v220, %v222
        %v229 = vmul.f32 %v221, %v223
        %v230 = vld [vmem:[%s1] sm:$0xff]
        %v231 = vld [vmem:[%s1 + $0x8] sm:$0xff]
        %vm232 = vcmask 130048
        %v234 = vsel %vm232, %v220, 0
        %v237 = vsel %vm232, %v221, 0
        %v240 = vsel %vm232, %v222, 0
        %v243 = vsel %vm232, %v223, 0
        %v246 = vsel %vm232, %v224, 0
        %v249 = vsel %vm232, %v225, 0
        %v252 = vsel %vm232, %v226, 0
        %v255 = vsel %vm232, %v227, 0
        %v258 = vsel %vm232, %v228, 0
        %v261 = vsel %vm232, %v229, 0
        %263 = vmatprep.subr.mxu0 0.0
        %264 = vmatpush1.msra.mxu0 0.0
        %265 = vmatprep.subr.mxu0 0.0
        %266 = vmatpush1.msra.mxu0 0.0
        %267 = vmatprep.subr.mxu0 0.0
        %268 = vmatpush1.msra.mxu0 0.0
        %269 = vmatprep.subr.mxu0 0.0
        %270 = vmatpush1.msra.mxu0 0.0
        %271 = vmatprep.subr.mxu0 0.0
        %272 = vmatpush1.msra.mxu0 0.0
        %273 = vmatprep.subr.mxu0 0.0
        %274 = vmatpush1.msra.mxu0 0.0
        %275 = vmatprep.subr.mxu0 0.0
        %276 = vmatpush1.msra.mxu0 0.0
        %277 = vmatprep.subr.mxu0 0.0
        %278 = vmatpush1.msra.mxu0 0.0
        %279 = vmatprep.subr.mxu0 0.0
        %280 = vmatpush1.msra.mxu0 0.0
        %281 = vmatprep.subr.mxu0 0.0
        %282 = vmatpush1.msra.mxu0 0.0
        %283 = vmatprep.subr.mxu0 0.0
        %284 = vmatpush1.msra.mxu0 0.0
        %285 = vmatprep.subr.mxu0 0.0
        %286 = vmatpush1.msra.mxu0 0.0
        %287 = vmatprep.subr.mxu0 0.0
        %288 = vmatpush1.msra.mxu0 0.0
        %289 = vmatprep.subr.mxu0 0.0
        %290 = vmatpush1.msra.mxu0 0.0
        %291 = vmatprep.subr.mxu0 0.0
        %292 = vmatpush1.msra.mxu0 %v231
        %293 = vmatprep.subr.mxu0 0.0
        %294 = vmatpush1.msra.mxu0 %v230
        %295 = vmatprep.subr.mxu0 0.0
        %296 = vmatpush2.msra.mxu0 0.0
        %297 = vmatprep.subr.mxu0 0.0
        %298 = vmatpush2.msra.mxu0 0.0
        %299 = vmatprep.subr.mxu0 0.0
        %300 = vmatpush2.msra.mxu0 0.0
        %301 = vmatprep.subr.mxu0 0.0
        %302 = vmatpush2.msra.mxu0 0.0
        %303 = vmatprep.subr.mxu0 0.0
        %304 = vmatpush2.msra.mxu0 0.0
        %305 = vmatprep.subr.mxu0 0.0
        %306 = vmatpush2.msra.mxu0 0.0
        %307 = vmatprep.subr.mxu0 0.0
        %308 = vmatpush2.msra.mxu0 0.0
        %309 = vmatprep.subr.mxu0 0.0
        %310 = vmatpush2.msra.mxu0 0.0
        %311 = vmatprep.subr.mxu0 0.0
        %312 = vmatpush2.msra.mxu0 0.0
        %313 = vmatprep.subr.mxu0 0.0
        %314 = vmatpush2.msra.mxu0 0.0
        %315 = vmatprep.subr.mxu0 0.0
        %316 = vmatpush2.msra.mxu0 0.0
        %317 = vmatprep.subr.mxu0 0.0
        %318 = vmatpush2.msra.mxu0 0.0
        %319 = vmatprep.subr.mxu0 0.0
        %320 = vmatpush2.msra.mxu0 0.0
        %321 = vmatprep.subr.mxu0 0.0
        %322 = vmatpush2.msra.mxu0 0.0
        %323 = vmatprep.subr.mxu0 0.0
        %324 = vmatpush2.msra.mxu0 0.0
        %325 = vmatprep.subr.mxu0 0.0
        %326 = vmatpush2.msra.mxu0 0.0
        %327 = vmatprep.mubr.f32.mxu0 0.0
        %328 = vmatmul.mubr.f32.gmra.mxu0 %v234
        %v329 = vpop.f32.mrf.mxu0
        %v330 = vadd.f32 0.0, %v329
        %v331 = vpop.f32.mrf.mxu0
        %332 = vmatprep.mubr.f32.mxu0 0.0
        %333 = vmatmul.mubr.f32.gmra.mxu0 %v237
        %v334 = vpop.f32.mrf.mxu0
        %v335 = vadd.f32 0.0, %v334
        %v336 = vpop.f32.mrf.mxu0
        %337 = vmatprep.mubr.f32.mxu0 0.0
        %338 = vmatmul.mubr.f32.gmra.mxu0 %v240
        %v339 = vpop.f32.mrf.mxu0
        %v340 = vadd.f32 0.0, %v339
        %v341 = vpop.f32.mrf.mxu0
        %342 = vmatprep.mubr.f32.mxu0 0.0
        %343 = vmatmul.mubr.f32.gmra.mxu0 %v243
        %v344 = vpop.f32.mrf.mxu0
        %v345 = vadd.f32 0.0, %v344
        %v346 = vpop.f32.mrf.mxu0
        %347 = vmatprep.mubr.f32.mxu0 0.0
        %348 = vmatmul.mubr.f32.gmra.mxu0 %v246
        %v349 = vpop.f32.mrf.mxu0
        %v350 = vadd.f32 0.0, %v349
        %v351 = vpop.f32.mrf.mxu0
        %352 = vmatprep.mubr.f32.mxu0 0.0
        %353 = vmatmul.mubr.f32.gmra.mxu0 %v249
        %v354 = vpop.f32.mrf.mxu0
        %v355 = vadd.f32 0.0, %v354
        %v356 = vpop.f32.mrf.mxu0
        %357 = vmatprep.mubr.f32.mxu0 0.0
        %358 = vmatmul.mubr.f32.gmra.mxu0 %v252
        %v359 = vpop.f32.mrf.mxu0
        %v360 = vadd.f32 0.0, %v359
        %v361 = vpop.f32.mrf.mxu0
        %362 = vmatprep.mubr.f32.mxu0 0.0
        %363 = vmatmul.mubr.f32.gmra.mxu0 %v255
        %v364 = vpop.f32.mrf.mxu0
        %v365 = vadd.f32 0.0, %v364
        %v366 = vpop.f32.mrf.mxu0
        %367 = vmatprep.mubr.f32.mxu0 0.0
        %368 = vmatmul.mubr.f32.gmra.mxu0 %v258
        %v369 = vpop.f32.mrf.mxu0
        %v370 = vadd.f32 0.0, %v369
        %v371 = vpop.f32.mrf.mxu0
        %372 = vmatprep.mubr.f32.mxu0 0.0
        %373 = vmatmul.mubr.f32.gmra.mxu0 %v261
        %v374 = vpop.f32.mrf.mxu0
        %v375 = vadd.f32 0.0, %v374
        %v376 = vpop.f32.mrf.mxu0
        %377 = vdwg.mxu0
        %v378 = vld [vmem:[%s0] sm:$0xff]
        %v379 = vld [vmem:[%s0 + $0x8] sm:$0xff]
        %v381 = vsel %vm232, %v378, 0
        %v384 = vsel %vm232, %v379, 0
        %386 = vmatprep.subr.mxu0 0.0
        %387 = vmatpush1.msra.mxu0 0.0
        %388 = vmatprep.subr.mxu0 0.0
        %389 = vmatpush1.msra.mxu0 0.0
        %390 = vmatprep.subr.mxu0 0.0
        %391 = vmatpush1.msra.mxu0 0.0
        %392 = vmatprep.subr.mxu0 0.0
        %393 = vmatpush1.msra.mxu0 0.0
        %394 = vmatprep.subr.mxu0 0.0
        %395 = vmatpush1.msra.mxu0 0.0
        %396 = vmatprep.subr.mxu0 0.0
        %397 = vmatpush1.msra.mxu0 0.0
        %398 = vmatprep.subr.mxu0 0.0
        %399 = vmatpush1.msra.mxu0 0.0
        %400 = vmatprep.subr.mxu0 0.0
        %401 = vmatpush1.msra.mxu0 0.0
        %402 = vmatprep.subr.mxu0 0.0
        %403 = vmatpush1.msra.mxu0 0.0
        %404 = vmatprep.subr.mxu0 0.0
        %405 = vmatpush1.msra.mxu0 0.0
        %406 = vmatprep.subr.mxu0 0.0
        %407 = vmatpush1.msra.mxu0 0.0
        %408 = vmatprep.subr.mxu0 0.0
        %409 = vmatpush1.msra.mxu0 0.0
        %410 = vmatprep.subr.mxu0 0.0
        %411 = vmatpush1.msra.mxu0 0.0
        %412 = vmatprep.subr.mxu0 0.0
        %413 = vmatpush1.msra.mxu0 0.0
        %414 = vmatprep.subr.mxu0 0.0
        %415 = vmatpush1.msra.mxu0 %v335
        %416 = vmatprep.subr.mxu0 0.0
        %417 = vmatpush1.msra.mxu0 %v330
        %418 = vmatprep.subr.mxu0 0.0
        %419 = vmatpush2.msra.mxu0 0.0
        %420 = vmatprep.subr.mxu0 0.0
        %421 = vmatpush2.msra.mxu0 0.0
        %422 = vmatprep.subr.mxu0 0.0
        %423 = vmatpush2.msra.mxu0 0.0
        %424 = vmatprep.subr.mxu0 0.0
        %425 = vmatpush2.msra.mxu0 0.0
        %426 = vmatprep.subr.mxu0 0.0
        %427 = vmatpush2.msra.mxu0 0.0
        %428 = vmatprep.subr.mxu0 0.0
        %429 = vmatpush2.msra.mxu0 0.0
        %430 = vmatprep.subr.mxu0 0.0
        %431 = vmatpush2.msra.mxu0 0.0
        %432 = vmatprep.subr.mxu0 0.0
        %433 = vmatpush2.msra.mxu0 0.0
        %434 = vmatprep.subr.mxu0 0.0
        %435 = vmatpush2.msra.mxu0 0.0
        %436 = vmatprep.subr.mxu0 0.0
        %437 = vmatpush2.msra.mxu0 0.0
        %438 = vmatprep.subr.mxu0 0.0
        %439 = vmatpush2.msra.mxu0 0.0
        %440 = vmatprep.subr.mxu0 0.0
        %441 = vmatpush2.msra.mxu0 0.0
        %442 = vmatprep.subr.mxu0 0.0
        %443 = vmatpush2.msra.mxu0 0.0
        %444 = vmatprep.subr.mxu0 0.0
        %445 = vmatpush2.msra.mxu0 0.0
        %446 = vmatprep.subr.mxu0 0.0
        %447 = vmatpush2.msra.mxu0 0.0
        %448 = vmatprep.subr.mxu0 0.0
        %449 = vmatpush2.msra.mxu0 0.0
        %450 = vmatprep.mubr.f32.mxu0 0.0
        %451 = vmatmul.mubr.f32.gmra.mxu0 %v381
        %v452 = vpop.f32.mrf.mxu0
        %v453 = vadd.f32 0.0, %v452
        %v454 = vpop.f32.mrf.mxu0
        %455 = vmatprep.mubr.f32.mxu0 0.0
        %456 = vmatmul.mubr.f32.gmra.mxu0 %v384
        %v457 = vpop.f32.mrf.mxu0
        %v458 = vadd.f32 0.0, %v457
        %v459 = vpop.f32.mrf.mxu0
        %460 = vdwg.mxu0
        %461 = vmatprep.subr.mxu0 0.0
        %462 = vmatpush1.msra.mxu0 0.0
        %463 = vmatprep.subr.mxu0 0.0
        %464 = vmatpush1.msra.mxu0 0.0
        %465 = vmatprep.subr.mxu0 0.0
        %466 = vmatpush1.msra.mxu0 0.0
        %467 = vmatprep.subr.mxu0 0.0
        %468 = vmatpush1.msra.mxu0 0.0
        %469 = vmatprep.subr.mxu0 0.0
        %470 = vmatpush1.msra.mxu0 0.0
        %471 = vmatprep.subr.mxu0 0.0
        %472 = vmatpush1.msra.mxu0 0.0
        %473 = vmatprep.subr.mxu0 0.0
        %474 = vmatpush1.msra.mxu0 0.0
        %475 = vmatprep.subr.mxu0 0.0
        %476 = vmatpush1.msra.mxu0 0.0
        %477 = vmatprep.subr.mxu0 0.0
        %478 = vmatpush1.msra.mxu0 0.0
        %479 = vmatprep.subr.mxu0 0.0
        %480 = vmatpush1.msra.mxu0 0.0
        %481 = vmatprep.subr.mxu0 0.0
        %482 = vmatpush1.msra.mxu0 0.0
        %483 = vmatprep.subr.mxu0 0.0
        %484 = vmatpush1.msra.mxu0 0.0
        %485 = vmatprep.subr.mxu0 0.0
        %486 = vmatpush1.msra.mxu0 0.0
        %487 = vmatprep.subr.mxu0 0.0
        %488 = vmatpush1.msra.mxu0 0.0
        %489 = vmatprep.subr.mxu0 0.0
        %490 = vmatpush1.msra.mxu0 %v345
        %491 = vmatprep.subr.mxu0 0.0
        %492 = vmatpush1.msra.mxu0 %v340
        %493 = vmatprep.subr.mxu0 0.0
        %494 = vmatpush2.msra.mxu0 0.0
        %495 = vmatprep.subr.mxu0 0.0
        %496 = vmatpush2.msra.mxu0 0.0
        %497 = vmatprep.subr.mxu0 0.0
        %498 = vmatpush2.msra.mxu0 0.0
        %499 = vmatprep.subr.mxu0 0.0
        %500 = vmatpush2.msra.mxu0 0.0
        %501 = vmatprep.subr.mxu0 0.0
        %502 = vmatpush2.msra.mxu0 0.0
        %503 = vmatprep.subr.mxu0 0.0
        %504 = vmatpush2.msra.mxu0 0.0
        %505 = vmatprep.subr.mxu0 0.0
        %506 = vmatpush2.msra.mxu0 0.0
        %507 = vmatprep.subr.mxu0 0.0
        %508 = vmatpush2.msra.mxu0 0.0
        %509 = vmatprep.subr.mxu0 0.0
        %510 = vmatpush2.msra.mxu0 0.0
        %511 = vmatprep.subr.mxu0 0.0
        %512 = vmatpush2.msra.mxu0 0.0
        %513 = vmatprep.subr.mxu0 0.0
        %514 = vmatpush2.msra.mxu0 0.0
        %515 = vmatprep.subr.mxu0 0.0
        %516 = vmatpush2.msra.mxu0 0.0
        %517 = vmatprep.subr.mxu0 0.0
        %518 = vmatpush2.msra.mxu0 0.0
        %519 = vmatprep.subr.mxu0 0.0
        %520 = vmatpush2.msra.mxu0 0.0
        %521 = vmatprep.subr.mxu0 0.0
        %522 = vmatpush2.msra.mxu0 0.0
        %523 = vmatprep.subr.mxu0 0.0
        %524 = vmatpush2.msra.mxu0 0.0
        %525 = vmatprep.mubr.f32.mxu0 0.0
        %526 = vmatmul.mubr.f32.gmra.mxu0 %v381
        %v527 = vpop.f32.mrf.mxu0
        %v528 = vadd.f32 0.0, %v527
        %v529 = vpop.f32.mrf.mxu0
        %530 = vmatprep.mubr.f32.mxu0 0.0
        %531 = vmatmul.mubr.f32.gmra.mxu0 %v384
        %v532 = vpop.f32.mrf.mxu0
        %v533 = vadd.f32 0.0, %v532
        %v534 = vpop.f32.mrf.mxu0
        %535 = vdwg.mxu0
        %536 = vmatprep.subr.mxu0 0.0
        %537 = vmatpush1.msra.mxu0 0.0
        %538 = vmatprep.subr.mxu0 0.0
        %539 = vmatpush1.msra.mxu0 0.0
        %540 = vmatprep.subr.mxu0 0.0
        %541 = vmatpush1.msra.mxu0 0.0
        %542 = vmatprep.subr.mxu0 0.0
        %543 = vmatpush1.msra.mxu0 0.0
        %544 = vmatprep.subr.mxu0 0.0
        %545 = vmatpush1.msra.mxu0 0.0
        %546 = vmatprep.subr.mxu0 0.0
        %547 = vmatpush1.msra.mxu0 0.0
        %548 = vmatprep.subr.mxu0 0.0
        %549 = vmatpush1.msra.mxu0 0.0
        %550 = vmatprep.subr.mxu0 0.0
        %551 = vmatpush1.msra.mxu0 0.0
        %552 = vmatprep.subr.mxu0 0.0
        %553 = vmatpush1.msra.mxu0 0.0
        %554 = vmatprep.subr.mxu0 0.0
        %555 = vmatpush1.msra.mxu0 0.0
        %556 = vmatprep.subr.mxu0 0.0
        %557 = vmatpush1.msra.mxu0 0.0
        %558 = vmatprep.subr.mxu0 0.0
        %559 = vmatpush1.msra.mxu0 0.0
        %560 = vmatprep.subr.mxu0 0.0
        %561 = vmatpush1.msra.mxu0 0.0
        %562 = vmatprep.subr.mxu0 0.0
        %563 = vmatpush1.msra.mxu0 0.0
        %564 = vmatprep.subr.mxu0 0.0
        %565 = vmatpush1.msra.mxu0 %v355
        %566 = vmatprep.subr.mxu0 0.0
        %567 = vmatpush1.msra.mxu0 %v350
        %568 = vmatprep.subr.mxu0 0.0
        %569 = vmatpush2.msra.mxu0 0.0
        %570 = vmatprep.subr.mxu0 0.0
        %571 = vmatpush2.msra.mxu0 0.0
        %572 = vmatprep.subr.mxu0 0.0
        %573 = vmatpush2.msra.mxu0 0.0
        %574 = vmatprep.subr.mxu0 0.0
        %575 = vmatpush2.msra.mxu0 0.0
        %576 = vmatprep.subr.mxu0 0.0
        %577 = vmatpush2.msra.mxu0 0.0
        %578 = vmatprep.subr.mxu0 0.0
        %579 = vmatpush2.msra.mxu0 0.0
        %580 = vmatprep.subr.mxu0 0.0
        %581 = vmatpush2.msra.mxu0 0.0
        %582 = vmatprep.subr.mxu0 0.0
        %583 = vmatpush2.msra.mxu0 0.0
        %584 = vmatprep.subr.mxu0 0.0
        %585 = vmatpush2.msra.mxu0 0.0
        %586 = vmatprep.subr.mxu0 0.0
        %587 = vmatpush2.msra.mxu0 0.0
        %588 = vmatprep.subr.mxu0 0.0
        %589 = vmatpush2.msra.mxu0 0.0
        %590 = vmatprep.subr.mxu0 0.0
        %591 = vmatpush2.msra.mxu0 0.0
        %592 = vmatprep.subr.mxu0 0.0
        %593 = vmatpush2.msra.mxu0 0.0
        %594 = vmatprep.subr.mxu0 0.0
        %595 = vmatpush2.msra.mxu0 0.0
        %596 = vmatprep.subr.mxu0 0.0
        %597 = vmatpush2.msra.mxu0 0.0
        %598 = vmatprep.subr.mxu0 0.0
        %599 = vmatpush2.msra.mxu0 0.0
        %600 = vmatprep.mubr.f32.mxu0 0.0
        %601 = vmatmul.mubr.f32.gmra.mxu0 %v381
        %v602 = vpop.f32.mrf.mxu0
        %v603 = vadd.f32 0.0, %v602
        %v604 = vpop.f32.mrf.mxu0
        %605 = vmatprep.mubr.f32.mxu0 0.0
        %606 = vmatmul.mubr.f32.gmra.mxu0 %v384
        %v607 = vpop.f32.mrf.mxu0
        %v608 = vadd.f32 0.0, %v607
        %v609 = vpop.f32.mrf.mxu0
        %610 = vdwg.mxu0
        %611 = vmatprep.subr.mxu0 0.0
        %612 = vmatpush1.msra.mxu0 0.0
        %613 = vmatprep.subr.mxu0 0.0
        %614 = vmatpush1.msra.mxu0 0.0
        %615 = vmatprep.subr.mxu0 0.0
        %616 = vmatpush1.msra.mxu0 0.0
        %617 = vmatprep.subr.mxu0 0.0
        %618 = vmatpush1.msra.mxu0 0.0
        %619 = vmatprep.subr.mxu0 0.0
        %620 = vmatpush1.msra.mxu0 0.0
        %621 = vmatprep.subr.mxu0 0.0
        %622 = vmatpush1.msra.mxu0 0.0
        %623 = vmatprep.subr.mxu0 0.0
        %624 = vmatpush1.msra.mxu0 0.0
        %625 = vmatprep.subr.mxu0 0.0
        %626 = vmatpush1.msra.mxu0 0.0
        %627 = vmatprep.subr.mxu0 0.0
        %628 = vmatpush1.msra.mxu0 0.0
        %629 = vmatprep.subr.mxu0 0.0
        %630 = vmatpush1.msra.mxu0 0.0
        %631 = vmatprep.subr.mxu0 0.0
        %632 = vmatpush1.msra.mxu0 0.0
        %633 = vmatprep.subr.mxu0 0.0
        %634 = vmatpush1.msra.mxu0 0.0
        %635 = vmatprep.subr.mxu0 0.0
        %636 = vmatpush1.msra.mxu0 0.0
        %637 = vmatprep.subr.mxu0 0.0
        %638 = vmatpush1.msra.mxu0 0.0
        %639 = vmatprep.subr.mxu0 0.0
        %640 = vmatpush1.msra.mxu0 %v365
        %641 = vmatprep.subr.mxu0 0.0
        %642 = vmatpush1.msra.mxu0 %v360
        %643 = vmatprep.subr.mxu0 0.0
        %644 = vmatpush2.msra.mxu0 0.0
        %645 = vmatprep.subr.mxu0 0.0
        %646 = vmatpush2.msra.mxu0 0.0
        %647 = vmatprep.subr.mxu0 0.0
        %648 = vmatpush2.msra.mxu0 0.0
        %649 = vmatprep.subr.mxu0 0.0
        %650 = vmatpush2.msra.mxu0 0.0
        %651 = vmatprep.subr.mxu0 0.0
        %652 = vmatpush2.msra.mxu0 0.0
        %653 = vmatprep.subr.mxu0 0.0
        %654 = vmatpush2.msra.mxu0 0.0
        %655 = vmatprep.subr.mxu0 0.0
        %656 = vmatpush2.msra.mxu0 0.0
        %657 = vmatprep.subr.mxu0 0.0
        %658 = vmatpush2.msra.mxu0 0.0
        %659 = vmatprep.subr.mxu0 0.0
        %660 = vmatpush2.msra.mxu0 0.0
        %661 = vmatprep.subr.mxu0 0.0
        %662 = vmatpush2.msra.mxu0 0.0
        %663 = vmatprep.subr.mxu0 0.0
        %664 = vmatpush2.msra.mxu0 0.0
        %665 = vmatprep.subr.mxu0 0.0
        %666 = vmatpush2.msra.mxu0 0.0
        %667 = vmatprep.subr.mxu0 0.0
        %668 = vmatpush2.msra.mxu0 0.0
        %669 = vmatprep.subr.mxu0 0.0
        %670 = vmatpush2.msra.mxu0 0.0
        %671 = vmatprep.subr.mxu0 0.0
        %672 = vmatpush2.msra.mxu0 0.0
        %673 = vmatprep.subr.mxu0 0.0
        %674 = vmatpush2.msra.mxu0 0.0
        %675 = vmatprep.mubr.f32.mxu0 0.0
        %676 = vmatmul.mubr.f32.gmra.mxu0 %v381
        %v677 = vpop.f32.mrf.mxu0
        %v678 = vadd.f32 0.0, %v677
        %v679 = vpop.f32.mrf.mxu0
        %680 = vmatprep.mubr.f32.mxu0 0.0
        %681 = vmatmul.mubr.f32.gmra.mxu0 %v384
        %v682 = vpop.f32.mrf.mxu0
        %v683 = vadd.f32 0.0, %v682
        %v684 = vpop.f32.mrf.mxu0
        %685 = vdwg.mxu0
        %686 = vmatprep.subr.mxu0 0.0
        %687 = vmatpush1.msra.mxu0 0.0
        %688 = vmatprep.subr.mxu0 0.0
        %689 = vmatpush1.msra.mxu0 0.0
        %690 = vmatprep.subr.mxu0 0.0
        %691 = vmatpush1.msra.mxu0 0.0
        %692 = vmatprep.subr.mxu0 0.0
        %693 = vmatpush1.msra.mxu0 0.0
        %694 = vmatprep.subr.mxu0 0.0
        %695 = vmatpush1.msra.mxu0 0.0
        %696 = vmatprep.subr.mxu0 0.0
        %697 = vmatpush1.msra.mxu0 0.0
        %698 = vmatprep.subr.mxu0 0.0
        %699 = vmatpush1.msra.mxu0 0.0
        %700 = vmatprep.subr.mxu0 0.0
        %701 = vmatpush1.msra.mxu0 0.0
        %702 = vmatprep.subr.mxu0 0.0
        %703 = vmatpush1.msra.mxu0 0.0
        %704 = vmatprep.subr.mxu0 0.0
        %705 = vmatpush1.msra.mxu0 0.0
        %706 = vmatprep.subr.mxu0 0.0
        %707 = vmatpush1.msra.mxu0 0.0
        %708 = vmatprep.subr.mxu0 0.0
        %709 = vmatpush1.msra.mxu0 0.0
        %710 = vmatprep.subr.mxu0 0.0
        %711 = vmatpush1.msra.mxu0 0.0
        %712 = vmatprep.subr.mxu0 0.0
        %713 = vmatpush1.msra.mxu0 0.0
        %714 = vmatprep.subr.mxu0 0.0
        %715 = vmatpush1.msra.mxu0 %v375
        %716 = vmatprep.subr.mxu0 0.0
        %717 = vmatpush1.msra.mxu0 %v370
        %718 = vmatprep.subr.mxu0 0.0
        %719 = vmatpush2.msra.mxu0 0.0
        %720 = vmatprep.subr.mxu0 0.0
        %721 = vmatpush2.msra.mxu0 0.0
        %722 = vmatprep.subr.mxu0 0.0
        %723 = vmatpush2.msra.mxu0 0.0
        %724 = vmatprep.subr.mxu0 0.0
        %725 = vmatpush2.msra.mxu0 0.0
        %726 = vmatprep.subr.mxu0 0.0
        %727 = vmatpush2.msra.mxu0 0.0
        %728 = vmatprep.subr.mxu0 0.0
        %729 = vmatpush2.msra.mxu0 0.0
        %730 = vmatprep.subr.mxu0 0.0
        %731 = vmatpush2.msra.mxu0 0.0
        %732 = vmatprep.subr.mxu0 0.0
        %733 = vmatpush2.msra.mxu0 0.0
        %734 = vmatprep.subr.mxu0 0.0
        %735 = vmatpush2.msra.mxu0 0.0
        %736 = vmatprep.subr.mxu0 0.0
        %737 = vmatpush2.msra.mxu0 0.0
        %738 = vmatprep.subr.mxu0 0.0
        %739 = vmatpush2.msra.mxu0 0.0
        %740 = vmatprep.subr.mxu0 0.0
        %741 = vmatpush2.msra.mxu0 0.0
        %742 = vmatprep.subr.mxu0 0.0
        %743 = vmatpush2.msra.mxu0 0.0
        %744 = vmatprep.subr.mxu0 0.0
        %745 = vmatpush2.msra.mxu0 0.0
        %746 = vmatprep.subr.mxu0 0.0
        %747 = vmatpush2.msra.mxu0 0.0
        %748 = vmatprep.subr.mxu0 0.0
        %749 = vmatpush2.msra.mxu0 0.0
        %750 = vmatprep.mubr.f32.mxu0 0.0
        %751 = vmatmul.mubr.f32.gmra.mxu0 %v381
        %v752 = vpop.f32.mrf.mxu0
        %v753 = vadd.f32 0.0, %v752
        %v754 = vpop.f32.mrf.mxu0
        %755 = vmatprep.mubr.f32.mxu0 0.0
        %756 = vmatmul.mubr.f32.gmra.mxu0 %v384
        %v757 = vpop.f32.mrf.mxu0
        %v758 = vadd.f32 0.0, %v757
        %v759 = vpop.f32.mrf.mxu0
        %760 = vdwg.mxu0
        %v761 = vmul.f32 %v453, %v528
        %v762 = vmul.f32 %v458, %v533
        %v763 = vmul.f32 %v761, 0.012345679
        %v764 = vmul.f32 %v762, 0.012345679
        %v765 = vsub.f32 %v753, %v763
        %v766 = vsub.f32 %v758, %v764
        %v767 = vmul.f32 %v453, %v453
        %v768 = vmul.f32 %v458, %v458
        %v769 = vmul.f32 %v767, 0.012345679
        %v770 = vmul.f32 %v768, 0.012345679
        %v771 = vsub.f32 %v603, %v769
        %v772 = vsub.f32 %v608, %v770
        %v773 = vmul.f32 %v528, %v528
        %v774 = vmul.f32 %v533, %v533
        %v775 = vmul.f32 %v773, 0.012345679
        %v776 = vmul.f32 %v774, 0.012345679
        %v777 = vsub.f32 %v678, %v775
        %v778 = vsub.f32 %v683, %v776
        %v779 = vmul.f32 %v765, %v765
        %v780 = vmul.f32 %v766, %v766
        %v781 = vmul.f32 %v771, %v777
        %v782 = vmul.f32 %v772, %v778
        %v783 = vadd.f32 %v781, 1e-05
        %v784 = vadd.f32 %v782, 1e-05
        %v785 = vrcp.pop %v783
        %v786 = vrcp.pop %v784
        %v787 = vmul.f32 %v779, %v785
        %v788 = vmul.f32 %v780, %v786
        %v789 = vadd.f32 %v787, %v788
        %790 = vst [vmem:[%s207] sm:$0xff] %v789
        %s791 = sand.u32 %s120, 1
        %s792 = scalar_lea.sflag [#allocation3], %s791
        %s793 = sand.u32 %s120, 1
        %s794 = smul.addr %s793, 8
        %s795 = scalar_lea.vmem [#allocation2], %s794
        // Predicated region
        $region37: #{tpu_custom_call.1} parent=35 // pred_check
          %p796 = pneg %p130
        $region38: #{tpu_custom_call.1} parent=35 // pred_check_branch
          %798 = sbr.rel (%p796) target = $region40
        $region39: #{tpu_custom_call.1} parent=35 // pred_region
          %s800 = ssub.s32 128, 128
          %801 = vsyncadd %s792, %s800
          %s802 = smul.addr %s18, 128
          %s803 = scalar_lea.hbm %s4, %s802
          %s805 = sshll.u32 %s795, 4
          %s806 = int_to_ptr.vmem [resolvable:$true] %s805
          %808 = dma.vmem_to_hbm [thread:$0]  %s806, 128, %s803, %s792
        $region40: #{tpu_custom_call.1} parent=35 // pred_fallthru
          _
      $region36: #{tpu_custom_call.1} parent=5 // pred_fallthru
        _
      %p809 = scmp.le.s32.totalorder 2, %s13
      // Predicated region
      $region41: #{tpu_custom_call.1} parent=5 // pred_check
        %p810 = pneg %p809
      $region42: #{tpu_custom_call.1} parent=5 // pred_check_branch
        %812 = sbr.rel (%p810) target = $region44
      $region43: #{tpu_custom_call.1} parent=5 // pred_region
        %s813 = ssub.s32 %s13, 2
        // Predicated region
        $region45: #{tpu_custom_call.1} parent=43 // pred_check
          %p814 = pneg %p136
        $region46: #{tpu_custom_call.1} parent=43 // pred_check_branch
          %816 = sbr.rel (%p814) target = $region48
        $region47: #{tpu_custom_call.1} parent=43 // pred_region
          %s817 = sand.u32 %s121, 1
          %s818 = scalar_lea.sflag [#allocation3], %s817
          %s819 = sand.u32 %s121, 1
          %s820 = smul.addr %s819, 8
          %s821 = scalar_lea.vmem [#allocation2], %s820
          %822 = dma.done %s818, 128
        $region48: #{tpu_custom_call.1} parent=43 // pred_fallthru
          _
      $region44: #{tpu_custom_call.1} parent=5 // pred_fallthru
        _
    $region6: #{tpu_custom_call.1} parent=1 // loop_footer
      %s17 = sadd.s32 1, %s13
    $region7: #{tpu_custom_call.1} parent=1 // loop_footer_branch
      %12 = sbr.rel target = $region3
    $region8: #{tpu_custom_call.1} parent=1 // loop_exit
      _
    %823 = vsyncpa [#allocation3], 1
    %s824 = scalar_lea.sflag [#allocation3], 1
    %825 = vsyncpa %s824, 1

</llo_original>
